<compile_context>
chip_gen: v5e
topology: v5e:2x2
jax: 0.10.0
libtpu: 0.0.40
codegen_flags: <defaults>
</compile_context>

<pallas_src>
import functools

import jax
import jax.numpy as jnp
from jax import lax
from jax.experimental import pallas as pl
from jax.experimental.pallas import tpu as pltpu


_EPS_SQ = 1e-24  # (1e-12)^2 — F.normalize eps, applied to the squared norm


def _round_up(x, m):
    return ((x + m - 1) // m) * m


def _contrastive_loss_kernel(inv_t_ref, v_ref, a_ref, loss_ref, *,
                             num_valid, mxu_dtype):
    """One row-block of queries against all (pre-normalized) keys.

    v_ref:    [tm, Dp]  raw visual rows for this grid step
    a_ref:    [Bp, Dp]  normalized audio rows (already cast to mxu_dtype)
    loss_ref: [1, tm]   per-row cross-entropy loss (lane-dense)
    """
    inv_t = inv_t_ref[0]                       # 1/temperature (SMEM scalar)
    tm = v_ref.shape[0]
    bp = a_ref.shape[0]

    # F.normalize(x, dim=1) == x * rsqrt(max(||x||^2, eps^2)).  Fold 1/T into
    # the normalized queries so both the logits and the diagonal come out
    # pre-scaled (one [tm, Dp] multiply instead of a [Bp, tm] divide).
    v = v_ref[...].astype(jnp.float32)
    v = v * lax.rsqrt(jnp.maximum(jnp.sum(v * v, axis=1, keepdims=True), _EPS_SQ))
    v = (v * inv_t).astype(mxu_dtype)

    # Transposed similarity slab: sim[j, r] = <a_j, v_r> / T  ->  [Bp, tm].
    # Keys live on sublanes, queries on lanes, so the per-query reductions
    # below produce [1, tm] lane-dense rows directly (no relayout, unmasked
    # stores into the (1, B) output).
    sim = lax.dot_general(a_ref[...], v,
                          dimension_numbers=(((1,), (1,)), ((), ())),
                          preferred_element_type=jnp.float32)

    start = pl.multiple_of(pl.program_id(0) * tm, tm)
    key_idx = lax.broadcasted_iota(jnp.int32, (bp, tm), 0)
    qry_idx = lax.broadcasted_iota(jnp.int32, (bp, tm), 1) + start

    if num_valid != bp:     # static: drop zero-padded keys from the softmax
        sim = jnp.where(key_idx < num_valid, sim, -jnp.inf)

    # Diagonal logit sim[start+r, r] taken from the same MXU output as the
    # logsumexp, so the bf16 rounding of the matmul is consistent between the
    # two terms of the loss.
    diag = jnp.sum(jnp.where(key_idx == qry_idx, sim, 0.0),
                   axis=0, keepdims=True)                       # [1, tm]

    # Numerically stable log-sum-exp over the key (sublane) axis.
    m = jnp.max(sim, axis=0, keepdims=True)                     # [1, tm]
    lse = m + jnp.log(jnp.sum(jnp.exp(sim - m), axis=0, keepdims=True))

    loss_ref[...] = lse - diag                                  # [1, tm]


def _audio_spec(bp, dp):
    # The audio block index is constant across the grid, so it is DMA'd once.
    # Ask for a single buffer so it is not double-allocated (matters on v7x's
    # 64 MiB per-core VMEM); fall back gracefully if pipeline_mode/Buffered is
    # not available in this JAX version.
    index_map = lambda i: (0, 0)
    buffered = getattr(pl, "Buffered", None)
    if buffered is not None:
        try:
            return pl.BlockSpec((bp, dp), index_map, pipeline_mode=buffered(1))
        except TypeError:
            pass
    return pl.BlockSpec((bp, dp), index_map)


def contrastive_loss(visual_feat, audio_feat, temperature=0.07, *,
                     use_bf16_matmul=True):
    """visual_feat, audio_feat: [batch, feature_dim] -> scalar f32 loss."""
    b, d = visual_feat.shape
    assert audio_feat.shape == (b, d)
    mxu_dtype = jnp.bfloat16 if use_bf16_matmul else jnp.float32

    # --- Row tile / grid selection ---------------------------------------
    # The lane-dense [1, tm] output block needs tm % 128 == 0 unless the grid
    # is a single step.  Small batches run in one step; larger batches use
    # tm = 128 (>= 2 steps keeps both v7x TensorCores busy under "parallel");
    # big batches use tm = 256 to amortize per-step overhead.
    if b <= 128:
        tm = _round_up(b, 8)
    elif b <= 1024:
        tm = 128
    else:
        tm = 256  # TODO(synk): bump to 512 on v6e (128 MiB VMEM) if profiled worthwhile
    bp = _round_up(b, tm)            # batch padded to a whole number of tiles
    dp = _round_up(d, 128)           # lane-dense feature axis
    grid = (bp // tm,)

    # --- Wrapper-side preprocessing (one fused XLA pass) -----------------
    # Key-side normalization is hoisted out of the kernel so it is not redone
    # every grid step; the bf16 cast for the MXU happens at the same time.
    a32 = audio_feat.astype(jnp.float32)
    a_n = a32 * lax.rsqrt(
        jnp.maximum(jnp.sum(a32 * a32, axis=1, keepdims=True), _EPS_SQ))
    a_n = a_n.astype(mxu_dtype)

    v_in = visual_feat
    if (bp, dp) != (b, d):
        v_in = jnp.pad(v_in, ((0, bp - b), (0, dp - d)))
        a_n = jnp.pad(a_n, ((0, bp - b), (0, dp - d)))

    inv_t = jnp.full((1,), 1.0 / temperature, dtype=jnp.float32)

    # --- VMEM budget ------------------------------------------------------
    in_isz = jnp.dtype(v_in.dtype).itemsize
    mxu_isz = jnp.dtype(mxu_dtype).itemsize
    est = 2 * tm * dp * in_isz          # visual blocks (double-buffered)
    est += 2 * bp * dp * mxu_isz        # audio residency (2x covers fallback path)
    est += 2 * tm * dp * 4              # f32 working copies of the query block
    est += 5 * bp * tm * 4              # similarity slab + elementwise temporaries
    est += 2 << 20                      # slack
    try:
        phys = int(pltpu.get_tpu_info().vmem_capacity_bytes)
    except Exception:
        phys = 64 << 20                 # v7x per-core size: safe everywhere
    vmem_limit = int(min(max(est, 32 << 20), (phys * 3) // 4))
    # TODO(synk): for very large batches (where bp*dp + ~5*bp*tm*4 bytes no
    # longer fits the clamp) add a key-axis-tiled variant with a flash-style
    # online logsumexp instead of keeping all keys + the full slab resident.

    kernel = functools.partial(_contrastive_loss_kernel,
                               num_valid=b, mxu_dtype=mxu_dtype)

    row_losses = pl.pallas_call(
        kernel,
        grid=grid,
        out_shape=jax.ShapeDtypeStruct((1, bp), jnp.float32),
        in_specs=[
            pl.BlockSpec(memory_space=pltpu.MemorySpace.SMEM),   # 1/temperature
            pl.BlockSpec((tm, dp), lambda i: (i, 0)),            # visual rows
            _audio_spec(bp, dp),                                 # all audio rows
        ],
        out_specs=pl.BlockSpec((1, tm), lambda i: (0, i)),       # lane-dense
        compiler_params=pltpu.CompilerParams(
            dimension_semantics=("parallel",),
            vmem_limit_bytes=vmem_limit),
    )(inv_t, v_in, a_n)

    # cross_entropy default reduction="mean" over the real batch rows.
    return jnp.sum(row_losses[0, :b]) / b


def _reference_loss(visual_feat, audio_feat, temperature=0.07):
    v = visual_feat / jnp.maximum(
        jnp.linalg.norm(visual_feat, axis=1, keepdims=True), 1e-12)
    a = audio_feat / jnp.maximum(
        jnp.linalg.norm(audio_feat, axis=1, keepdims=True), 1e-12)
    sim = jnp.dot(v, a.T, precision=jax.lax.Precision.HIGHEST) / temperature
    logp = jax.nn.log_softmax(sim, axis=1)
    return -jnp.mean(jnp.diagonal(logp))


if __name__ == "__main__":
    key = jax.random.PRNGKey(0)
    k1, k2, k3, k4 = jax.random.split(key, 4)

    # Case 1: tiny batch, single grid step, f32 MXU -> tight check.
    b1, d1 = 8, 32
    v1 = jax.random.normal(k1, (b1, d1), dtype=jnp.float32)
    a1 = jax.random.normal(k2, (b1, d1), dtype=jnp.float32)
    loss1 = contrastive_loss(v1, a1, temperature=0.07, use_bf16_matmul=False)
    jax.block_until_ready(loss1)
    ref1 = _reference_loss(v1, a1, temperature=0.07)
    assert jnp.allclose(loss1, ref1, rtol=1e-3, atol=1e-3), (loss1, ref1)

    # Case 2: multi-step grid with batch padding/masking, default bf16 MXU.
    b2, d2 = 160, 72
    v2 = jax.random.normal(k3, (b2, d2), dtype=jnp.float32)
    a2 = jax.random.normal(k4, (b2, d2), dtype=jnp.float32)
    loss2 = contrastive_loss(v2, a2, temperature=0.07)
    jax.block_until_ready(loss2)
    ref2 = _reference_loss(v2, a2, temperature=0.07)
    assert jnp.allclose(loss2, ref2, rtol=5e-2, atol=5e-2), (loss2, ref2)

    print("KERNEL_OK")
</pallas_src>

<mosaic_0001>
module attributes {stable_mosaic.version = 11 : i64} {
  func.func @_contrastive_loss_kernel(%arg0: i32, %arg1: memref<1xf32, #tpu.memory_space<smem>>, %arg2: memref<8x128xf32, #tpu.memory_space<vmem>>, %arg3: memref<8x128xf32, #tpu.memory_space<vmem>>, %arg4: memref<1x8xf32, #tpu.memory_space<vmem>>) attributes {dimension_semantics = [#tpu.dimension_semantics<parallel>], iteration_bounds = array<i64: 1>, scalar_prefetch = 0 : i64, scratch_operands = 0 : i64, tpu.core_type = #tpu.core_type<tc>, window_params = [{transform_indices = @transform_0, window_bounds = array<i64: 1>}, {transform_indices = @transform_1, window_bounds = array<i64: 8, 128>}, {pipeline_mode = #tpu.pipeline_mode<synchronous>, transform_indices = @transform_2, window_bounds = array<i64: 8, 128>}, {transform_indices = @transform_3, window_bounds = array<i64: 1, 8>}]} {
    %c0 = arith.constant 0 : index
    %0 = memref.load %arg1[%c0] : memref<1xf32, #tpu.memory_space<smem>>
    %c0_0 = arith.constant 0 : index
    %c0_1 = arith.constant 0 : index
    %1 = vector.load %arg2[%c0_0, %c0_1] : memref<8x128xf32, #tpu.memory_space<vmem>>, vector<8x128xf32>
    %2 = arith.mulf %1, %1 : vector<8x128xf32>
    %cst = arith.constant dense<0.000000e+00> : vector<8xf32>
    %3 = vector.multi_reduction <add>, %2, %cst [1] : vector<8x128xf32> to vector<8xf32>
    %4 = vector.shape_cast %3 : vector<8xf32> to vector<8x1xf32>
    %cst_2 = arith.constant 1.000000e-24 : f32
    %5 = vector.broadcast %cst_2 : f32 to vector<8x1xf32>
    %6 = arith.maximumf %4, %5 : vector<8x1xf32>
    %7 = math.rsqrt %6 : vector<8x1xf32>
    %8 = vector.broadcast %7 : vector<8x1xf32> to vector<8x128xf32>
    %9 = arith.mulf %1, %8 : vector<8x128xf32>
    %10 = vector.broadcast %0 : f32 to vector<8x128xf32>
    %11 = arith.mulf %9, %10 : vector<8x128xf32>
    %c0_3 = arith.constant 0 : index
    %c0_4 = arith.constant 0 : index
    %12 = vector.load %arg3[%c0_3, %c0_4] : memref<8x128xf32, #tpu.memory_space<vmem>>, vector<8x128xf32>
    %cst_5 = arith.constant dense<0.000000e+00> : vector<8x8xf32>
    %13 = tpu.matmul %12, %11, %cst_5 {dimension_numbers = #tpu.dot_dimension_numbers<[1], [1], [0], [0], [0, 0, 1, 0], [], []>} : vector<8x128xf32>, vector<8x128xf32>, vector<8x8xf32> -> vector<8x8xf32>
    %c8_i32 = arith.constant 8 : i32
    %14 = arith.muli %arg0, %c8_i32 : i32
    %15 = tpu.assume_multiple %14, 8 : i32
    %16 = tpu.iota {dimensions = array<i32: 0>} : vector<8x8xi32>
    %17 = tpu.iota {dimensions = array<i32: 1>} : vector<8x8xi32>
    %18 = vector.broadcast %15 : i32 to vector<8x8xi32>
    %19 = arith.addi %17, %18 : vector<8x8xi32>
    %20 = arith.cmpi eq, %16, %19 : vector<8x8xi32>
    %cst_6 = arith.constant 0.000000e+00 : f32
    %21 = vector.broadcast %cst_6 : f32 to vector<8x8xf32>
    %22 = arith.select %20, %13, %21 : vector<8x8xi1>, vector<8x8xf32>
    %cst_7 = arith.constant dense<0.000000e+00> : vector<8xf32>
    %23 = vector.multi_reduction <add>, %22, %cst_7 [0] : vector<8x8xf32> to vector<8xf32>
    %24 = vector.shape_cast %23 : vector<8xf32> to vector<1x8xf32>
    %cst_8 = arith.constant dense<0xFF800000> : vector<8xf32>
    %25 = vector.multi_reduction <maximumf>, %13, %cst_8 [0] : vector<8x8xf32> to vector<8xf32>
    %26 = vector.shape_cast %25 : vector<8xf32> to vector<1x8xf32>
    %27 = vector.broadcast %26 : vector<1x8xf32> to vector<8x8xf32>
    %28 = arith.subf %13, %27 : vector<8x8xf32>
    %29 = math.exp %28 : vector<8x8xf32>
    %cst_9 = arith.constant dense<0.000000e+00> : vector<8xf32>
    %30 = vector.multi_reduction <add>, %29, %cst_9 [0] : vector<8x8xf32> to vector<8xf32>
    %31 = vector.shape_cast %30 : vector<8xf32> to vector<1x8xf32>
    %32 = math.log %31 : vector<1x8xf32>
    %33 = arith.addf %26, %32 : vector<1x8xf32>
    %34 = arith.subf %33, %24 : vector<1x8xf32>
    %c0_10 = arith.constant 0 : index
    %c0_11 = arith.constant 0 : index
    %35 = vector.load %arg4[%c0_10, %c0_11] : memref<1x8xf32, #tpu.memory_space<vmem>>, vector<1x8xf32>
    tpu.vector_store %arg4[%c0_10, %c0_11], %34 {strides = array<i32>} : memref<1x8xf32, #tpu.memory_space<vmem>>, vector<1x8xf32>,
    return
  }
  func.func @transform_0(%arg0: i32) -> i32 {
    %c0_i32 = arith.constant 0 : i32
    %c0_i32_0 = arith.constant 0 : i32
    return %c0_i32 : i32
  }
  func.func @transform_1(%arg0: i32) -> (i32, i32) {
    %c0_i32 = arith.constant 0 : i32
    %c0_i32_0 = arith.constant 0 : i32
    return %arg0, %c0_i32 : i32, i32
  }
  func.func @transform_2(%arg0: i32) -> (i32, i32) {
    %c0_i32 = arith.constant 0 : i32
    %c0_i32_0 = arith.constant 0 : i32
    %c0_i32_1 = arith.constant 0 : i32
    return %c0_i32, %c0_i32_0 : i32, i32
  }
  func.func @transform_3(%arg0: i32) -> (i32, i32) {
    %c0_i32 = arith.constant 0 : i32
    %c0_i32_0 = arith.constant 0 : i32
    return %c0_i32, %arg0 : i32, i32
  }
}

</mosaic_0001>

<llo_original>
// kernel: tpu_custom_call.1
$region0: #{tpu_custom_call.1}
  #allocation0 [shape = 'u32[]', space=smem, size = 0x4, offset = 0x4, fixed_abs, tag = 'smem constant byte address 0x4 - core index']
  #allocation1 [shape = 'u32[72,128]{1,0:T(1,128)}', space=vmem, size = 0x9000, scoped, tag = 'internal scratch']
  #allocation2 [shape = 'f32[1]{0:T(128)S(6)}', space=smem, size = 0x200, scoped, tag = 'scoped memory for tpu_custom_call.1']
  %s0 = inlined_call_operand.<no memory space> [shape: f32[1], index: 0, kind: input, shape index: {}]
  %s1 = inlined_call_operand.hbm [shape: f32[8,128], index: 1, kind: input, shape index: {}]
  %s2 = inlined_call_operand.hbm [shape: f32[8,128], index: 2, kind: input, shape index: {}]
  %s3 = inlined_call_operand.hbm [shape: f32[1,8], index: 3, kind: output, shape index: {}]
  %s4 = sld [smem:[#allocation0]]
  $region30: #{tpu_custom_call.1} parent=0
    _
  %s6 = ssub.s32 1, %s4
  %s7 = scalar_select 0, %s6, %s4
  %8 = sst [smem:[#allocation2]] %s0
  $region1: #{tpu_custom_call.1} parent=0
    #allocation3 [shape = 'u8[4096]{0}', space=vmem, size = 0x1000, scoped, tag = 'input window, operand 1, single buffered']
    #allocation4 [shape = 's32[1]{0}', space=sflag, size = 0x4, scoped, tag = 'scoped memory for tpu_custom_call.1']
    #allocation5 [shape = 's32[1]{0}', space=sflag, size = 0x4, scoped, tag = 'scoped memory for tpu_custom_call.1']
    #allocation6 [shape = 'u8[4096]{0}', space=vmem, size = 0x1000, scoped, tag = 'input window, operand 2, single buffered']
    #allocation7 [shape = 's32[1]{0}', space=sflag, size = 0x4, scoped, tag = 'scoped memory for tpu_custom_call.1']
    #allocation8 [shape = 'u8[512]{0}', space=vmem, size = 0x400, scoped, tag = 'output window, operand 0, single buffered']
    %9 = vsyncpa [#allocation4], 0
    %10 = vsyncpa [#allocation7], 0
    %11 = vsyncpa [#allocation5], 0
    // Predicated region
    $region2: #{tpu_custom_call.1} parent=1 // pred_check
      _
    $region3: #{tpu_custom_call.1} parent=1 // pred_check_branch
      %13 = sbr.rel (0) target = $region5
    $region4: #{tpu_custom_call.1} parent=1 // pred_region
      _
    $region5: #{tpu_custom_call.1} parent=1 // pred_fallthru
      _
    // Predicated region
    $region6: #{tpu_custom_call.1} parent=1 // pred_check
      _
    $region7: #{tpu_custom_call.1} parent=1 // pred_check_branch
      %15 = sbr.rel (0) target = $region9
    $region8: #{tpu_custom_call.1} parent=1 // pred_region
      %17 = vsyncadd [#allocation4], 0
      %s19 = sshll.u32 %s1, 4
      %s20 = int_to_ptr.hbm [resolvable:$true] %s19
      %s21 = sshll.u32 [#allocation3], 4
      %s22 = int_to_ptr.vmem [resolvable:$true] %s21
      %24 = dma.hbm_to_vmem [thread:$0]  %s20, 128, %s22, [#allocation4]
    $region9: #{tpu_custom_call.1} parent=1 // pred_fallthru
      _
    // Predicated region
    $region10: #{tpu_custom_call.1} parent=1 // pred_check
      _
    $region11: #{tpu_custom_call.1} parent=1 // pred_check_branch
      %26 = sbr.rel (0) target = $region13
    $region12: #{tpu_custom_call.1} parent=1 // pred_region
      %28 = vsyncadd [#allocation7], 0
      %s30 = sshll.u32 %s2, 4
      %s31 = int_to_ptr.hbm [resolvable:$true] %s30
      %s32 = sshll.u32 [#allocation6], 4
      %s33 = int_to_ptr.vmem [resolvable:$true] %s32
      %35 = dma.hbm_to_vmem [thread:$0]  %s31, 128, %s33, [#allocation7]
    $region13: #{tpu_custom_call.1} parent=1 // pred_fallthru
      _
    // Predicated region
    $region14: #{tpu_custom_call.1} parent=1 // pred_check
      _
    $region15: #{tpu_custom_call.1} parent=1 // pred_check_branch
      %37 = sbr.rel (0) target = $region17
    $region16: #{tpu_custom_call.1} parent=1 // pred_region
      %39 = dma.done [#allocation4], 128
    $region17: #{tpu_custom_call.1} parent=1 // pred_fallthru
      _
    // Predicated region
    $region18: #{tpu_custom_call.1} parent=1 // pred_check
      _
    $region19: #{tpu_custom_call.1} parent=1 // pred_check_branch
      %41 = sbr.rel (0) target = $region21
    $region20: #{tpu_custom_call.1} parent=1 // pred_region
      %43 = dma.done [#allocation7], 128
    $region21: #{tpu_custom_call.1} parent=1 // pred_fallthru
      _
    %s44 = sld [smem:[#allocation2]]
    %v45 = vld [vmem:[#allocation3] sm:$0xff]
    %v46 = vmul.f32 %v45, %v45
    %47 = vadd.xlane.f32.xlu0 %v46
    %v48 = vpop.xlane.xlu0 %47
    %v49 = vmax.f32 %v48, 1e-24
    %v50 = vrsqrt.pop %v49
    %v51 = vmul.f32 %v50, %v49
    %v52 = vmul.f32 %v51, %v50
    %v53 = vmul.f32 0.5, %v52
    %v54 = vsub.f32 1.5, %v53
    %v55 = vmul.f32 %v50, %v54
    %vm56 = vweird.f32 %v49
    %vm57 = vweird.f32 %v50
    %vm58 = vmor %vm56, %vm57
    %v59 = vsel %vm58, %v50, %v55
    %v60 = vmul.f32 %v45, %v59
    %v61 = vstv %s44
    %v62 = vmul.f32 %v60, %v61
    %v63 = vld [vmem:[#allocation6] sm:$0xff]
    %64 = vmatpush.xpose.msra.mxu0 0.0
    %65 = vmatpush.xpose.msra.mxu0 0.0
    %66 = vmatpush.xpose.msra.mxu0 0.0
    %67 = vmatpush.xpose.msra.mxu0 0.0
    %68 = vmatpush.xpose.msra.mxu0 0.0
    %69 = vmatpush.xpose.msra.mxu0 0.0
    %70 = vmatpush.xpose.msra.mxu0 0.0
    %71 = vmatpush.xpose.msra.mxu0 0.0
    %72 = vmatpush.xpose.msra.mxu0 0.0
    %73 = vmatpush.xpose.msra.mxu0 0.0
    %74 = vmatpush.xpose.msra.mxu0 0.0
    %75 = vmatpush.xpose.msra.mxu0 0.0
    %76 = vmatpush.xpose.msra.mxu0 0.0
    %77 = vmatpush.xpose.msra.mxu0 0.0
    %78 = vmatpush.xpose.msra.mxu0 0.0
    %79 = vmatpush.xpose.msra.mxu0 %v62
    %80 = vmatmul.f32.gmra.mxu0 %v63
    %v81 = vpop.f32.mrf.mxu0
    %v82 = vadd.f32 0.0, %v81
    %83 = vdwg.mxu0
    %s84 = smul.u32 0, 8
    %v85 = vlaneseq
    %v86 = vshrl.u32 %v85, 7
    %v87 = vlaneseq
    %v88 = vand.u32 %v87, 127
    %v89 = vstv %s84
    %v90 = vadd.s32 %v88, %v89
    %vm91 = vcmp.eq.s32.totalorder %v86, %v90
    %v92 = vsel %vm91, %v82, 0.0
    %vm93 = vcmask 64512
    %v94 = vsel %vm93, %v92, 0.0
    %v95 = vrot.slane %v94, 4
    %v96 = vadd.f32 %v94, %v95
    %v97 = vrot.slane %v96, 2
    %v98 = vadd.f32 %v96, %v97
    %v99 = vrot.slane %v98, 1
    %v100 = vadd.f32 %v98, %v99
    %v101 = vsel %vm93, %v82, -inf
    %v102 = vrot.slane %v101, 4
    %v103 = vmax.f32 %v101, %v102
    %v104 = vrot.slane %v103, 2
    %v105 = vmax.f32 %v103, %v104
    %v106 = vrot.slane %v105, 1
    %v107 = vmax.f32 %v105, %v106
    %v108 = vsub.f32 %v82, %v107
    %v109 = vmul.f32 %v108, 1.442695
    %v110 = vpow.pop %v109
    %v111 = vsel %vm93, %v110, 0.0
    %v112 = vrot.slane %v111, 4
    %v113 = vadd.f32 %v111, %v112
    %v114 = vrot.slane %v113, 2
    %v115 = vadd.f32 %v113, %v114
    %v116 = vrot.slane %v115, 1
    %v117 = vadd.f32 %v115, %v116
    %v118 = vlog2.pop %v117
    %v119 = vmul.f32 %v118, 0.6931472
    %v120 = vadd.f32 %v107, %v119
    %v121 = vsub.f32 %v120, %v100
    %vm122 = vcmask 57344
    %123 = vst.msk [vmem:[#allocation8] sm:$0x1] %vm122, %v121
    // Predicated region
    $region22: #{tpu_custom_call.1} parent=1 // pred_check
      _
    $region23: #{tpu_custom_call.1} parent=1 // pred_check_branch
      %125 = sbr.rel (0) target = $region25
    $region24: #{tpu_custom_call.1} parent=1 // pred_region
      %127 = vsyncadd [#allocation5], 0
      %s129 = sshll.u32 [#allocation8], 4
      %s130 = int_to_ptr.vmem [resolvable:$true] %s129
      %s131 = sshll.u32 %s3, 4
      %s132 = int_to_ptr.hbm [resolvable:$true] %s131
      %134 = dma.vmem_to_hbm [thread:$0]  %s130, 16, %s132, [#allocation5]
    $region25: #{tpu_custom_call.1} parent=1 // pred_fallthru
      _
    // Predicated region
    $region26: #{tpu_custom_call.1} parent=1 // pred_check
      _
    $region27: #{tpu_custom_call.1} parent=1 // pred_check_branch
      %136 = sbr.rel (0) target = $region29
    $region28: #{tpu_custom_call.1} parent=1 // pred_region
      %138 = dma.done [#allocation5], 16
    $region29: #{tpu_custom_call.1} parent=1 // pred_fallthru
      _
    %139 = vsyncpa [#allocation4], 1
    %140 = vsyncpa [#allocation7], 1
    %141 = vsyncpa [#allocation5], 1

</llo_original>
